<compile_context>
chip_gen: v5e
topology: v5e:2x2
jax: 0.10.0
libtpu: 0.0.40
codegen_flags: <defaults>
</compile_context>

<pallas_src>
import functools

import jax
import jax.numpy as jnp
from jax import lax
from jax.experimental import pallas as pl
from jax.experimental.pallas import tpu as pltpu

_LANE = 128
_SUBLANE = 8
_N_CHUNKS = 8                        # in-kernel chunking of each block
_DEFAULT_BLOCK_BYTES = 4 << 20       # per-stream HBM->VMEM block (double-buffered)
_SMALL_FASTPATH_ELEMS = 1 << 20      # below this, plain jnp beats a pallas_call


def _cdiv(a, b):
    return (a + b - 1) // b


def _round_up(a, b):
    return _cdiv(a, b) * b


def _sublane_align(dtype):
    return {4: 8, 2: 16, 1: 32}.get(jnp.dtype(dtype).itemsize, 8)


def _elementwise_loss(x, y, loss_type):
    """Per-element loss in f32 (matches torch BCEWithLogitsLoss / MSELoss)."""
    x = jnp.asarray(x, jnp.float32)
    y = jnp.asarray(y, jnp.float32)
    if loss_type == 'vanilla':
        # Numerically-stable BCE-with-logits: max(x,0) - x*y + log1p(exp(-|x|))
        return jnp.maximum(x, 0.0) - x * y + jnp.log1p(jnp.exp(-jnp.abs(x)))
    d = x - y
    return d * d


def _make_gan_sum_kernel(*, loss_type, blk, chunk, n_chunks, n_full_rows, rem,
                         const_label, has_label_stream):
    """Streaming sum-reduction kernel over (rows, 128) tiles.

    Output block (8,128) f32 is resident across the (single) reduction grid
    axis and acts as the accumulator; the cross-lane reduce happens once in
    the wrapper.
    """

    def kernel(*refs):
        if has_label_stream:
            pred_ref, label_ref, out_ref = refs
        else:
            pred_ref, out_ref = refs
            label_ref = None

        i = pl.program_id(0)

        @pl.when(i == 0)
        def _init():
            out_ref[...] = jnp.zeros_like(out_ref)

        row0 = i * blk

        def partial_sum(masked):
            acc = jnp.zeros((_SUBLANE, _LANE), jnp.float32)
            for c in range(n_chunks):
                start = c * chunk                      # static, aligned slice
                x = pred_ref[start:start + chunk, :]
                if has_label_stream:
                    y = label_ref[start:start + chunk, :]
                else:
                    y = const_label
                e = _elementwise_loss(x, y, loss_type)
                if masked:
                    row_ids = (row0 + start +
                               lax.broadcasted_iota(jnp.int32, (chunk, _LANE), 0))
                    valid = row_ids < n_full_rows
                    if rem:
                        lane_ids = lax.broadcasted_iota(
                            jnp.int32, (chunk, _LANE), 1)
                        valid = valid | ((row_ids == n_full_rows) &
                                         (lane_ids < rem))
                    e = jnp.where(valid, e, 0.0)
                # Collapse groups of 8 rows with VPU adds only (no cross-lane).
                acc = acc + jnp.sum(
                    e.reshape(chunk // _SUBLANE, _SUBLANE, _LANE), axis=0)
            return acc

        block_fully_valid = (row0 + blk) <= n_full_rows

        @pl.when(block_fully_valid)
        def _unmasked():
            out_ref[...] += partial_sum(masked=False)

        @pl.when(jnp.logical_not(block_fully_valid))
        def _masked():
            out_ref[...] += partial_sum(masked=True)

    return kernel


def gan_loss(pred, label=None, *, constant_label=None, loss_type='vanilla',
             loss_weight=1.0, min_pallas_elems=_SMALL_FASTPATH_ELEMS,
             block_bytes=_DEFAULT_BLOCK_BYTES):
    """Pallas implementation of GANLoss.forward(pred, label).

    `label` may be a full array (same shape as `pred`) or a Python scalar; a
    scalar (or explicit `constant_label=`) activates the single-stream path
    that skips streaming the label tensor from HBM entirely.
    """
    if constant_label is None and isinstance(label, (bool, int, float)):
        constant_label = label
    if constant_label is not None:
        constant_label = float(constant_label)
        streams = [pred]
    else:
        assert label is not None and pred.shape == label.shape, \
            "pred and label must have the same shape"
        streams = [pred, label]

    n_elems = int(pred.size)
    assert n_elems > 0
    align = max(_sublane_align(s.dtype) for s in streams)
    n_full_rows = n_elems // _LANE
    rem = n_elems % _LANE

    def _jnp_fallback():
        y = constant_label if constant_label is not None else label
        return jnp.mean(_elementwise_loss(pred, y, loss_type)) * loss_weight

    # Small-input fast path: plain XLA fusion beats a pallas_call launch.
    if n_elems < min_pallas_elems or n_full_rows < align:
        return _jnp_fallback()

    # ---- lay out the inputs as (rows, 128).
    if rem == 0:
        rows = n_full_rows
        arrs = [jnp.reshape(s, (rows, _LANE)) for s in streams]   # zero-copy
    else:
        # One padding copy; the tail is folded into the in-kernel mask.
        rows = _round_up(_cdiv(n_elems, _LANE), align)
        pad = rows * _LANE - n_elems
        arrs = [jnp.pad(jnp.reshape(s, (-1,)), (0, pad)).reshape(rows, _LANE)
                for s in streams]

    # ---- block / chunk selection.
    max_itemsize = max(jnp.dtype(s.dtype).itemsize for s in streams)
    blk_max = (rows // align) * align
    target_rows = max(align, block_bytes // (_LANE * max_itemsize))
    blk = min(target_rows, blk_max)
    blk = max(align, (blk // align) * align)
    unit = _N_CHUNKS * align
    if blk >= unit:
        blk = (blk // unit) * unit
        chunk = blk // _N_CHUNKS
        n_chunks = _N_CHUNKS
    else:
        chunk = blk
        n_chunks = 1
    num_blocks = _cdiv(rows, blk)

    # ---- VMEM budget: 2x double-buffered input blocks + chunked f32 temps.
    vmem_bytes = sum(2 * blk * _LANE * jnp.dtype(s.dtype).itemsize
                     for s in streams)
    vmem_bytes += 8 * chunk * _LANE * 4          # f32 chunk intermediates
    vmem_bytes += 4 * _SUBLANE * _LANE * 4       # accumulator / output
    vmem_limit = int(min(max(vmem_bytes + (2 << 20), 24 << 20), 56 << 20))

    kernel = _make_gan_sum_kernel(
        loss_type=loss_type, blk=blk, chunk=chunk, n_chunks=n_chunks,
        n_full_rows=n_full_rows, rem=rem, const_label=constant_label,
        has_label_stream=(constant_label is None))

    in_spec = pl.BlockSpec((blk, _LANE), lambda i: (i, 0))
    out_spec = pl.BlockSpec((_SUBLANE, _LANE), lambda i: (0, 0))

    bytes_accessed = int(sum(a.size * jnp.dtype(a.dtype).itemsize for a in arrs)
                         + _SUBLANE * _LANE * 4)
    flops = int((8 if loss_type == 'vanilla' else 3) * rows * _LANE)
    transcendentals = int(2 * rows * _LANE) if loss_type == 'vanilla' else 0

    partials = pl.pallas_call(
        kernel,
        out_shape=jax.ShapeDtypeStruct((_SUBLANE, _LANE), jnp.float32),
        grid_spec=pltpu.PrefetchScalarGridSpec(
            num_scalar_prefetch=0,
            grid=(num_blocks,),
            in_specs=[in_spec] * len(arrs),
            out_specs=out_spec,
        ),
        compiler_params=pltpu.CompilerParams(
            dimension_semantics=("arbitrary",),
            vmem_limit_bytes=vmem_limit),
        cost_estimate=pl.CostEstimate(
            flops=flops, transcendentals=transcendentals,
            bytes_accessed=bytes_accessed),
    )(*arrs)

    total = jnp.sum(partials)
    return total * (float(loss_weight) / float(n_elems))


class GANLoss:
    """JAX/Pallas port of mmseg GANLoss (vanilla -> BCEWithLogits, else -> MSE)."""

    def __init__(self, loss_type='vanilla', loss_name='loss_gan', loss_weight=1.0):
        self.loss_type = loss_type
        self.loss_weight = loss_weight
        self._loss_name = loss_name

    def __call__(self, pred, label):
        # `label` may be a full tensor or a Python scalar (constant GAN target).
        return gan_loss(pred, label,
                        loss_type=self.loss_type,
                        loss_weight=self.loss_weight)

    @property
    def loss_name(self):
        return self._loss_name


def _reference(pred, label, loss_type, loss_weight):
    return jnp.mean(_elementwise_loss(pred, label, loss_type)) * loss_weight


if __name__ == "__main__":
    key = jax.random.PRNGKey(0)
    k1, k2, k3, k4 = jax.random.split(key, 4)

    ok = True

    # 1) Small NCHW discriminator map, forced through the Pallas path,
    #    both streamed-label and constant-label paths, both loss types.
    pred = jax.random.normal(k1, (2, 4, 16, 16), dtype=jnp.float32)
    label = jnp.ones((2, 4, 16, 16), dtype=jnp.float32)
    for loss_type in ('vanilla', 'lsgan'):
        ref = _reference(pred, label, loss_type, 1.0)
        out_stream = jax.block_until_ready(
            gan_loss(pred, label, loss_type=loss_type, loss_weight=1.0,
                     min_pallas_elems=0))
        out_const = jax.block_until_ready(
            gan_loss(pred, 1.0, loss_type=loss_type, loss_weight=1.0,
                     min_pallas_elems=0))
        ok = ok and bool(jnp.allclose(out_stream, ref, rtol=1e-5, atol=1e-6))
        ok = ok and bool(jnp.allclose(out_const, ref, rtol=1e-5, atol=1e-6))

    # 2) Non-unit weight, random labels, size not a multiple of 128
    #    (pad + in-kernel element mask), small blocks to force 2 grid steps.
    pred2 = jax.random.normal(k2, (2, 3, 17, 19), dtype=jnp.float32)
    label2 = jax.random.uniform(k3, (2, 3, 17, 19), dtype=jnp.float32)
    out = jax.block_until_ready(
        gan_loss(pred2, label2, loss_type='vanilla', loss_weight=0.5,
                 min_pallas_elems=0, block_bytes=4096))
    ref = _reference(pred2, label2, 'vanilla', 0.5)
    ok = ok and bool(jnp.allclose(out, ref, rtol=1e-5, atol=1e-6))

    # 3) Multi-block + multi-chunk accumulation, constant label 0.0 (lsgan).
    pred3 = jax.random.normal(k4, (8, 8, 32, 32), dtype=jnp.float32)
    out = jax.block_until_ready(
        gan_loss(pred3, 0.0, loss_type='lsgan', loss_weight=1.0,
                 min_pallas_elems=0, block_bytes=1 << 15))
    ref = _reference(pred3, jnp.zeros_like(pred3), 'lsgan', 1.0)
    ok = ok and bool(jnp.allclose(out, ref, rtol=1e-5, atol=1e-6))

    # 4) bf16 logits with a constant GAN target (single-stream path).
    pred4 = jax.random.normal(k1, (4, 8, 64, 64), dtype=jnp.bfloat16)
    out = jax.block_until_ready(
        gan_loss(pred4, 1.0, loss_type='vanilla', loss_weight=1.0,
                 min_pallas_elems=0))
    ref = _reference(pred4, jnp.float32(1.0), 'vanilla', 1.0)
    ok = ok and bool(jnp.allclose(out, ref, rtol=2e-5, atol=1e-5))

    # 5) bf16 logits with a streamed f32 label tensor (mixed-dtype streams).
    label4 = jnp.ones((4, 8, 64, 64), dtype=jnp.float32)
    out = jax.block_until_ready(
        gan_loss(pred4, label4, loss_type='vanilla', loss_weight=1.0,
                 min_pallas_elems=0))
    ok = ok and bool(jnp.allclose(out, ref, rtol=2e-5, atol=1e-5))

    # 6) Default small-input fast path (pure jnp) through the module wrapper.
    mod = GANLoss(loss_type='vanilla', loss_weight=1.0)
    out = jax.block_until_ready(mod(pred, label))
    ref = _reference(pred, label, 'vanilla', 1.0)
    ok = ok and bool(jnp.allclose(out, ref, rtol=1e-5, atol=1e-6))

    if ok:
        print("KERNEL_OK")
</pallas_src>

<mosaic_0001>
module attributes {stable_mosaic.version = 11 : i64} {
  func.func @kernel(%arg0: i32, %arg1: memref<16x128xf32, #tpu.memory_space<vmem>>, %arg2: memref<16x128xf32, #tpu.memory_space<vmem>>, %arg3: memref<8x128xf32, #tpu.memory_space<vmem>>) attributes {dimension_semantics = [#tpu.dimension_semantics<arbitrary>], iteration_bounds = array<i64: 1>, scalar_prefetch = 0 : i64, scratch_operands = 0 : i64, tpu.core_type = #tpu.core_type<tc>, window_params = [{transform_indices = @transform_0, window_bounds = array<i64: 16, 128>}, {transform_indices = @transform_1, window_bounds = array<i64: 16, 128>}, {pipeline_mode = #tpu.pipeline_mode<synchronous>, transform_indices = @transform_2, window_bounds = array<i64: 8, 128>}]} {
    %c0_i32 = arith.constant 0 : i32
    %0 = arith.cmpi eq, %arg0, %c0_i32 : i32
    %1 = arith.extui %0 : i1 to i32
    %c0_i32_0 = arith.constant 0 : i32
    %2 = arith.cmpi ne, %1, %c0_i32_0 : i32
    scf.if %2 {
      %cst = arith.constant 0.000000e+00 : f32
      %11 = vector.broadcast %cst : f32 to vector<8x128xf32>
      %c0 = arith.constant 0 : index
      %c0_5 = arith.constant 0 : index
      %12 = vector.load %arg3[%c0, %c0_5] : memref<8x128xf32, #tpu.memory_space<vmem>>, vector<8x128xf32>
      tpu.vector_store %arg3[%c0, %c0_5], %11 {strides = array<i32>} : memref<8x128xf32, #tpu.memory_space<vmem>>, vector<8x128xf32>,
    } else {
    }
    %c16_i32 = arith.constant 16 : i32
    %3 = arith.muli %arg0, %c16_i32 : i32
    %c16_i32_1 = arith.constant 16 : i32
    %4 = arith.addi %3, %c16_i32_1 : i32
    %c16_i32_2 = arith.constant 16 : i32
    %5 = arith.cmpi sle, %4, %c16_i32_2 : i32
    %6 = arith.extui %5 : i1 to i32
    %c0_i32_3 = arith.constant 0 : i32
    %7 = arith.cmpi ne, %6, %c0_i32_3 : i32
    scf.if %7 {
      %c0 = arith.constant 0 : index
      %c0_5 = arith.constant 0 : index
      %11 = vector.load %arg3[%c0, %c0_5] : memref<8x128xf32, #tpu.memory_space<vmem>>, vector<8x128xf32>
      %cst = arith.constant 0.000000e+00 : f32
      %12 = vector.broadcast %cst : f32 to vector<8x128xf32>
      %c0_6 = arith.constant 0 : index
      %c0_7 = arith.constant 0 : index
      %13 = vector.load %arg1[%c0_6, %c0_7] : memref<16x128xf32, #tpu.memory_space<vmem>>, vector<16x128xf32>
      %c0_8 = arith.constant 0 : index
      %c0_9 = arith.constant 0 : index
      %14 = vector.load %arg2[%c0_8, %c0_9] : memref<16x128xf32, #tpu.memory_space<vmem>>, vector<16x128xf32>
      %cst_10 = arith.constant 0.000000e+00 : f32
      %15 = vector.broadcast %cst_10 : f32 to vector<16x128xf32>
      %16 = arith.maximumf %13, %15 : vector<16x128xf32>
      %17 = arith.mulf %13, %14 : vector<16x128xf32>
      %18 = arith.subf %16, %17 : vector<16x128xf32>
      %19 = math.absf %13 : vector<16x128xf32>
      %cst_11 = arith.constant 0.000000e+00 : f32
      %20 = vector.broadcast %cst_11 : f32 to vector<16x128xf32>
      %21 = arith.subf %20, %19 : vector<16x128xf32>
      %22 = math.exp %21 : vector<16x128xf32>
      %23 = math.log1p %22 : vector<16x128xf32>
      %24 = arith.addf %18, %23 : vector<16x128xf32>
      %25 = vector.shape_cast %24 : vector<16x128xf32> to vector<2x8x128xf32>
      %cst_12 = arith.constant dense<0.000000e+00> : vector<8x128xf32>
      %26 = vector.multi_reduction <add>, %25, %cst_12 [0] : vector<2x8x128xf32> to vector<8x128xf32>
      %27 = arith.addf %12, %26 : vector<8x128xf32>
      %28 = arith.addf %11, %27 : vector<8x128xf32>
      %c0_13 = arith.constant 0 : index
      %c0_14 = arith.constant 0 : index
      %29 = vector.load %arg3[%c0_13, %c0_14] : memref<8x128xf32, #tpu.memory_space<vmem>>, vector<8x128xf32>
      tpu.vector_store %arg3[%c0_13, %c0_14], %28 {strides = array<i32>} : memref<8x128xf32, #tpu.memory_space<vmem>>, vector<8x128xf32>,
    } else {
    }
    %true = arith.constant true
    %8 = arith.xori %5, %true : i1
    %9 = arith.extui %8 : i1 to i32
    %c0_i32_4 = arith.constant 0 : i32
    %10 = arith.cmpi ne, %9, %c0_i32_4 : i32
    scf.if %10 {
      %c0 = arith.constant 0 : index
      %c0_5 = arith.constant 0 : index
      %11 = vector.load %arg3[%c0, %c0_5] : memref<8x128xf32, #tpu.memory_space<vmem>>, vector<8x128xf32>
      %cst = arith.constant 0.000000e+00 : f32
      %12 = vector.broadcast %cst : f32 to vector<8x128xf32>
      %c0_6 = arith.constant 0 : index
      %c0_7 = arith.constant 0 : index
      %13 = vector.load %arg1[%c0_6, %c0_7] : memref<16x128xf32, #tpu.memory_space<vmem>>, vector<16x128xf32>
      %c0_8 = arith.constant 0 : index
      %c0_9 = arith.constant 0 : index
      %14 = vector.load %arg2[%c0_8, %c0_9] : memref<16x128xf32, #tpu.memory_space<vmem>>, vector<16x128xf32>
      %cst_10 = arith.constant 0.000000e+00 : f32
      %15 = vector.broadcast %cst_10 : f32 to vector<16x128xf32>
      %16 = arith.maximumf %13, %15 : vector<16x128xf32>
      %17 = arith.mulf %13, %14 : vector<16x128xf32>
      %18 = arith.subf %16, %17 : vector<16x128xf32>
      %19 = math.absf %13 : vector<16x128xf32>
      %cst_11 = arith.constant 0.000000e+00 : f32
      %20 = vector.broadcast %cst_11 : f32 to vector<16x128xf32>
      %21 = arith.subf %20, %19 : vector<16x128xf32>
      %22 = math.exp %21 : vector<16x128xf32>
      %23 = math.log1p %22 : vector<16x128xf32>
      %24 = arith.addf %18, %23 : vector<16x128xf32>
      %c0_i32_12 = arith.constant 0 : i32
      %25 = arith.addi %3, %c0_i32_12 : i32
      %26 = tpu.iota {dimensions = array<i32: 0>} : vector<16x128xi32>
      %27 = vector.broadcast %25 : i32 to vector<16x128xi32>
      %28 = arith.addi %27, %26 : vector<16x128xi32>
      %c16_i32_13 = arith.constant 16 : i32
      %29 = vector.broadcast %c16_i32_13 : i32 to vector<16x128xi32>
      %30 = arith.cmpi slt, %28, %29 : vector<16x128xi32>
      %cst_14 = arith.constant 0.000000e+00 : f32
      %31 = vector.broadcast %cst_14 : f32 to vector<16x128xf32>
      %32 = arith.select %30, %24, %31 : vector<16x128xi1>, vector<16x128xf32>
      %33 = vector.shape_cast %32 : vector<16x128xf32> to vector<2x8x128xf32>
      %cst_15 = arith.constant dense<0.000000e+00> : vector<8x128xf32>
      %34 = vector.multi_reduction <add>, %33, %cst_15 [0] : vector<2x8x128xf32> to vector<8x128xf32>
      %35 = arith.addf %12, %34 : vector<8x128xf32>
      %36 = arith.addf %11, %35 : vector<8x128xf32>
      %c0_16 = arith.constant 0 : index
      %c0_17 = arith.constant 0 : index
      %37 = vector.load %arg3[%c0_16, %c0_17] : memref<8x128xf32, #tpu.memory_space<vmem>>, vector<8x128xf32>
      tpu.vector_store %arg3[%c0_16, %c0_17], %36 {strides = array<i32>} : memref<8x128xf32, #tpu.memory_space<vmem>>, vector<8x128xf32>,
    } else {
    }
    return
  }
  func.func @transform_0(%arg0: i32) -> (i32, i32) {
    %c0_i32 = arith.constant 0 : i32
    %c0_i32_0 = arith.constant 0 : i32
    return %arg0, %c0_i32 : i32, i32
  }
  func.func @transform_1(%arg0: i32) -> (i32, i32) {
    %c0_i32 = arith.constant 0 : i32
    %c0_i32_0 = arith.constant 0 : i32
    return %arg0, %c0_i32 : i32, i32
  }
  func.func @transform_2(%arg0: i32) -> (i32, i32) {
    %c0_i32 = arith.constant 0 : i32
    %c0_i32_0 = arith.constant 0 : i32
    %c0_i32_1 = arith.constant 0 : i32
    return %c0_i32, %c0_i32_0 : i32, i32
  }
}

</mosaic_0001>

<llo_original>
// kernel: tpu_custom_call.1
$region0: #{tpu_custom_call.1}
  #allocation0 [shape = 'u32[]', space=smem, size = 0x4, offset = 0x4, fixed_abs, tag = 'smem constant byte address 0x4 - core index']
  #allocation1 [shape = 'u32[72,128]{1,0:T(1,128)}', space=vmem, size = 0x9000, scoped, tag = 'internal scratch']
  %s0 = inlined_call_operand.hbm [shape: f32[16,128], index: 0, kind: input, shape index: {}]
  %s1 = inlined_call_operand.hbm [shape: f32[16,128], index: 1, kind: input, shape index: {}]
  %s2 = inlined_call_operand.hbm [shape: f32[8,128], index: 2, kind: output, shape index: {}]
  %s3 = sld [smem:[#allocation0]]
  $region38: #{tpu_custom_call.1} parent=0
    _
  %s5 = ssub.s32 1, %s3
  %s6 = scalar_select 0, %s5, %s3
  $region1: #{tpu_custom_call.1} parent=0
    #allocation2 [shape = 'u8[8192]{0}', space=vmem, size = 0x2000, scoped, tag = 'input window, operand 0, single buffered']
    #allocation3 [shape = 's32[1]{0}', space=sflag, size = 0x4, scoped, tag = 'scoped memory for tpu_custom_call.1']
    #allocation4 [shape = 's32[1]{0}', space=sflag, size = 0x4, scoped, tag = 'scoped memory for tpu_custom_call.1']
    #allocation5 [shape = 'u8[8192]{0}', space=vmem, size = 0x2000, scoped, tag = 'input window, operand 1, single buffered']
    #allocation6 [shape = 's32[1]{0}', space=sflag, size = 0x4, scoped, tag = 'scoped memory for tpu_custom_call.1']
    #allocation7 [shape = 'u8[4096]{0}', space=vmem, size = 0x1000, scoped, tag = 'output window, operand 0, single buffered']
    %7 = vsyncpa [#allocation3], 0
    %8 = vsyncpa [#allocation6], 0
    %9 = vsyncpa [#allocation4], 0
    // Predicated region
    $region2: #{tpu_custom_call.1} parent=1 // pred_check
      _
    $region3: #{tpu_custom_call.1} parent=1 // pred_check_branch
      %11 = sbr.rel (0) target = $region5
    $region4: #{tpu_custom_call.1} parent=1 // pred_region
      %13 = vsyncadd [#allocation3], 0
      %s14 = sshll.u32 %s0, 4
      %s15 = int_to_ptr.hbm [resolvable:$true] %s14
      %s16 = sshll.u32 [#allocation2], 4
      %s17 = int_to_ptr.vmem [resolvable:$true] %s16
      %22 = dma.hbm_to_vmem [thread:$0]  %s15, 256, %s17, [#allocation3], 128, 128, 8
    $region5: #{tpu_custom_call.1} parent=1 // pred_fallthru
      _
    // Predicated region
    $region6: #{tpu_custom_call.1} parent=1 // pred_check
      _
    $region7: #{tpu_custom_call.1} parent=1 // pred_check_branch
      %24 = sbr.rel (0) target = $region9
    $region8: #{tpu_custom_call.1} parent=1 // pred_region
      %26 = vsyncadd [#allocation6], 0
      %s27 = sshll.u32 %s1, 4
      %s28 = int_to_ptr.hbm [resolvable:$true] %s27
      %s29 = sshll.u32 [#allocation5], 4
      %s30 = int_to_ptr.vmem [resolvable:$true] %s29
      %35 = dma.hbm_to_vmem [thread:$0]  %s28, 256, %s30, [#allocation6], 128, 128, 8
    $region9: #{tpu_custom_call.1} parent=1 // pred_fallthru
      _
    // Predicated region
    $region10: #{tpu_custom_call.1} parent=1 // pred_check
      _
    $region11: #{tpu_custom_call.1} parent=1 // pred_check_branch
      %37 = sbr.rel (0) target = $region13
    $region12: #{tpu_custom_call.1} parent=1 // pred_region
      %39 = dma.done [#allocation3], 256
    $region13: #{tpu_custom_call.1} parent=1 // pred_fallthru
      _
    // Predicated region
    $region14: #{tpu_custom_call.1} parent=1 // pred_check
      _
    $region15: #{tpu_custom_call.1} parent=1 // pred_check_branch
      %41 = sbr.rel (0) target = $region17
    $region16: #{tpu_custom_call.1} parent=1 // pred_region
      %43 = dma.done [#allocation6], 256
    $region17: #{tpu_custom_call.1} parent=1 // pred_fallthru
      _
    %p44 = scmp.eq.s32.totalorder 0, 0
    // Predicated region
    $region18: #{tpu_custom_call.1} parent=1 // pred_check
      %p45 = pneg %p44
    $region19: #{tpu_custom_call.1} parent=1 // pred_check_branch
      %47 = sbr.rel (%p45) target = $region21
    $region20: #{tpu_custom_call.1} parent=1 // pred_region
      %48 = vst [vmem:[#allocation7] sm:$0xff] 0.0
    $region21: #{tpu_custom_call.1} parent=1 // pred_fallthru
      _
    %s49 = smul.u32 0, 16
    %s50 = sadd.s32 %s49, 16
    %p51 = scmp.le.s32.totalorder %s50, 16
    // Predicated region
    $region22: #{tpu_custom_call.1} parent=1 // pred_check
      %p52 = pneg %p51
    $region23: #{tpu_custom_call.1} parent=1 // pred_check_branch
      %54 = sbr.rel (%p52) target = $region25
    $region24: #{tpu_custom_call.1} parent=1 // pred_region
      %v55 = vld [vmem:[#allocation7] sm:$0xff]
      %v56 = vld [vmem:[#allocation2] sm:$0xff]
      %v57 = vld [vmem:[#allocation2 + $0x8] sm:$0xff]
      %v58 = vld [vmem:[#allocation5] sm:$0xff]
      %v59 = vld [vmem:[#allocation5 + $0x8] sm:$0xff]
      %v60 = vmax.f32 %v56, 0.0
      %v61 = vmax.f32 %v57, 0.0
      %v62 = vmul.f32 %v56, %v58
      %v63 = vmul.f32 %v57, %v59
      %v64 = vsub.f32 %v60, %v62
      %v65 = vsub.f32 %v61, %v63
      %v66 = vand.u32 2147483647, %v56
      %v67 = vand.u32 2147483647, %v57
      %v68 = vsub.f32 0.0, %v66
      %v69 = vsub.f32 0.0, %v67
      %v70 = vmul.f32 %v68, 1.442695
      %v71 = vpow.pop %v70
      %v72 = vmul.f32 %v69, 1.442695
      %v73 = vpow.pop %v72
      %v74 = vadd.f32 %v71, 1.0
      %v75 = vlog2.pop %v74
      %v76 = vmul.f32 %v75, 0.6931472
      %v77 = vmul.f32 -0.5, %v71
      %v78 = vadd.f32 %v77, 1.0
      %v79 = vmul.f32 %v78, %v71
      %v80 = vand.u32 2147483647, %v71
      %vm81 = vcmp.lt.f32.partialorder %v80, 0.0004427343
      %v82 = vsel %vm81, %v79, %v76
      %v83 = vadd.f32 %v73, 1.0
      %v84 = vlog2.pop %v83
      %v85 = vmul.f32 %v84, 0.6931472
      %v86 = vmul.f32 -0.5, %v73
      %v87 = vadd.f32 %v86, 1.0
      %v88 = vmul.f32 %v87, %v73
      %v89 = vand.u32 2147483647, %v73
      %vm90 = vcmp.lt.f32.partialorder %v89, 0.0004427343
      %v91 = vsel %vm90, %v88, %v85
      %v92 = vadd.f32 %v64, %v82
      %v93 = vadd.f32 %v65, %v91
      %v94 = vadd.f32 %v92, %v93
      %v95 = vadd.f32 %v94, 0.0
      %v96 = vadd.f32 %v55, %v95
      %97 = vst [vmem:[#allocation7] sm:$0xff] %v96
    $region25: #{tpu_custom_call.1} parent=1 // pred_fallthru
      _
    %p98 = scmp.gt.s32.totalorder %s50, 16
    // Predicated region
    $region26: #{tpu_custom_call.1} parent=1 // pred_check
      %p99 = pneg %p98
    $region27: #{tpu_custom_call.1} parent=1 // pred_check_branch
      %101 = sbr.rel (%p99) target = $region29
    $region28: #{tpu_custom_call.1} parent=1 // pred_region
      %v102 = vld [vmem:[#allocation7] sm:$0xff]
      %v103 = vld [vmem:[#allocation2] sm:$0xff]
      %v104 = vld [vmem:[#allocation2 + $0x8] sm:$0xff]
      %v105 = vld [vmem:[#allocation5] sm:$0xff]
      %v106 = vld [vmem:[#allocation5 + $0x8] sm:$0xff]
      %v107 = vmax.f32 %v103, 0.0
      %v108 = vmax.f32 %v104, 0.0
      %v109 = vmul.f32 %v103, %v105
      %v110 = vmul.f32 %v104, %v106
      %v111 = vsub.f32 %v107, %v109
      %v112 = vsub.f32 %v108, %v110
      %v113 = vand.u32 2147483647, %v103
      %v114 = vand.u32 2147483647, %v104
      %v115 = vsub.f32 0.0, %v113
      %v116 = vsub.f32 0.0, %v114
      %v117 = vmul.f32 %v115, 1.442695
      %v118 = vpow.pop %v117
      %v119 = vmul.f32 %v116, 1.442695
      %v120 = vpow.pop %v119
      %v121 = vadd.f32 %v118, 1.0
      %v122 = vlog2.pop %v121
      %v123 = vmul.f32 %v122, 0.6931472
      %v124 = vmul.f32 -0.5, %v118
      %v125 = vadd.f32 %v124, 1.0
      %v126 = vmul.f32 %v125, %v118
      %v127 = vand.u32 2147483647, %v118
      %vm128 = vcmp.lt.f32.partialorder %v127, 0.0004427343
      %v129 = vsel %vm128, %v126, %v123
      %v130 = vadd.f32 %v120, 1.0
      %v131 = vlog2.pop %v130
      %v132 = vmul.f32 %v131, 0.6931472
      %v133 = vmul.f32 -0.5, %v120
      %v134 = vadd.f32 %v133, 1.0
      %v135 = vmul.f32 %v134, %v120
      %v136 = vand.u32 2147483647, %v120
      %vm137 = vcmp.lt.f32.partialorder %v136, 0.0004427343
      %v138 = vsel %vm137, %v135, %v132
      %v139 = vadd.f32 %v111, %v129
      %v140 = vadd.f32 %v112, %v138
      %v141 = vlaneseq
      %v142 = vshrl.u32 %v141, 7
      %v143 = vadd.s32 %v142, 8
      %v144 = vstv %s49
      %v145 = vadd.s32 %v144, %v142
      %v146 = vadd.s32 %v144, %v143
      %vm147 = vcmp.lt.s32.totalorder %v145, 16
      %vm148 = vcmp.lt.s32.totalorder %v146, 16
      %v149 = vsel %vm147, %v139, 0.0
      %v150 = vsel %vm148, %v140, 0.0
      %v151 = vadd.f32 %v149, %v150
      %v152 = vadd.f32 %v151, 0.0
      %v153 = vadd.f32 %v102, %v152
      %154 = vst [vmem:[#allocation7] sm:$0xff] %v153
    $region29: #{tpu_custom_call.1} parent=1 // pred_fallthru
      _
    // Predicated region
    $region30: #{tpu_custom_call.1} parent=1 // pred_check
      _
    $region31: #{tpu_custom_call.1} parent=1 // pred_check_branch
      %156 = sbr.rel (0) target = $region33
    $region32: #{tpu_custom_call.1} parent=1 // pred_region
      %158 = vsyncadd [#allocation4], 0
      %s160 = sshll.u32 [#allocation7], 4
      %s161 = int_to_ptr.vmem [resolvable:$true] %s160
      %s162 = sshll.u32 %s2, 4
      %s163 = int_to_ptr.hbm [resolvable:$true] %s162
      %165 = dma.vmem_to_hbm [thread:$0]  %s161, 128, %s163, [#allocation4]
    $region33: #{tpu_custom_call.1} parent=1 // pred_fallthru
      _
    // Predicated region
    $region34: #{tpu_custom_call.1} parent=1 // pred_check
      _
    $region35: #{tpu_custom_call.1} parent=1 // pred_check_branch
      %167 = sbr.rel (0) target = $region37
    $region36: #{tpu_custom_call.1} parent=1 // pred_region
      %169 = dma.done [#allocation4], 128
    $region37: #{tpu_custom_call.1} parent=1 // pred_fallthru
      _
    %170 = vsyncpa [#allocation3], 1
    %171 = vsyncpa [#allocation6], 1
    %172 = vsyncpa [#allocation4], 1

</llo_original>
